<compile_context>
chip_gen: v7x
topology: tpu7x:2x2x1
jax: 0.10.0
libtpu: 0.0.40
codegen_flags: <defaults>
</compile_context>

<pallas_src>
import functools

import numpy as np
import jax
import jax.numpy as jnp
from jax import lax
from jax.experimental import pallas as pl
from jax.experimental.pallas import tpu as pltpu


# ----------------------------------------------------------------------------
# Bicubic taps and folded 1-D resize matrices (exact PyTorch-module semantics)
# ----------------------------------------------------------------------------
_A = -0.75


def _cubic_taps(d):
    """Reproduces kernel(d) from the torch module: 4 taps at d + [-1,0,1,2]."""
    x = np.abs(d + np.arange(-1.0, 3.0, dtype=np.float64))
    near = (x < 1.0) * ((_A + 2.0) * x ** 3 - (_A + 3.0) * x ** 2 + 1.0)
    far = ((x >= 1.0) & (x < 2.0)) * (
        _A * x ** 3 - 5.0 * _A * x ** 2 + 8.0 * _A * x - 4.0 * _A)
    return near + far


_WE = _cubic_taps(-0.25)   # "even" taps
_WO = _cubic_taps(-0.75)   # "odd"  taps (= _WE reversed)


@functools.lru_cache(maxsize=None)
def _resize_matrix(n):
    """(2n, n) matrix = replicate-pad(2) -> {We,Wo} 4-tap conv -> interleave
    (even pre-crop rows/cols from We, odd from Wo) -> crop 1 on each side.

    After the crop, even output index m uses Wo at base m//2 and odd m uses
    We at base (m+1)//2; source indices are border-clamped with coefficient
    accumulation (matches replicate padding)."""
    m = np.zeros((2 * n, n), np.float64)
    for o in range(2 * n):
        if o % 2 == 0:
            base, taps = o // 2, _WO
        else:
            base, taps = (o + 1) // 2, _WE
        for t in range(4):
            src = min(max(base + t - 2, 0), n - 1)
            m[o, src] += taps[t]
    return m.astype(np.float32)


# ----------------------------------------------------------------------------
# VMEM budgeting (generation-aware) and block-size selection
# ----------------------------------------------------------------------------
@functools.lru_cache(maxsize=None)
def _vmem_limit_bytes():
    """Scoped-VMEM limit to request: 3/4 of physical VMEM, capped at 96 MiB.
    v5e/v6e (128 MiB) -> 96 MiB; v7x (64 MiB/TC) or unknown -> 48 MiB."""
    phys = 64 * 1024 * 1024                      # conservative fallback (v7x)
    try:
        phys = int(pltpu.get_tpu_info().vmem_capacity_bytes)
    except Exception:
        pass
    return min(phys * 3 // 4, 96 * 1024 * 1024)


def _choose_tiling(nc, h, w, in_isz, out_isz, comp_isz, vmem_limit, resident_bytes):
    """Pick (images per block, number of grid steps).

    Per-image VMEM accounting covers: double-buffered input block, double-
    buffered output block plus one output-sized matmul temp, and the height-
    pass scratch plus its loaded operand copy.  The (double-buffered) resident
    resize matrices are subtracted from the budget up front."""
    budget = max(int(vmem_limit * 0.45) - resident_bytes, 1 << 20)
    per_img = (2 * h * w * in_isz                     # input block  (x2 buffers)
               + 3 * (2 * h) * (2 * w) * out_isz      # output block (x2) + temp
               + 2 * (2 * h) * w * comp_isz)          # height scratch + copy
    cap = max(1, budget // per_img)
    num_blocks = -(-nc // cap)
    if nc > 1:
        num_blocks = max(num_blocks, 2)               # >=2 steps: pipelining
        num_blocks += num_blocks % 2                  # even: v7x 2-TC megacore
    bc = -(-nc // num_blocks)
    return bc, num_blocks


# ----------------------------------------------------------------------------
# Fused Pallas kernel: per block of bc images, out = RH @ x @ RW^T
# ----------------------------------------------------------------------------
def _pyrup_kernel(rh_ref, rwt_ref, x_ref, o_ref, yh_ref, *, bc):
    rh = rh_ref[...]                      # (2H, H)  VMEM-resident
    rwt = rwt_ref[...]                    # (W, 2W)  VMEM-resident
    h2 = rh.shape[0]
    w = rwt.shape[0]
    cdt = rh.dtype                        # compute dtype (f32 or bf16)

    # Height resize: per-image (2H,H)@(H,W) MXU matmul into VMEM scratch.
    # fori_loop (unrolled only when short) keeps live ranges / vregs bounded.
    def height_pass(b, carry):
        yh_ref[b] = jnp.dot(rh, x_ref[b].astype(cdt),
                            preferred_element_type=jnp.float32
                            ).astype(yh_ref.dtype)
        return carry

    if bc <= 16:
        lax.fori_loop(0, bc, height_pass, None, unroll=True)
    else:
        lax.fori_loop(0, bc, height_pass, None)

    # Width resize: ONE (bc*2H, W)@(W, 2W) MXU matmul; the whole output block
    # is written in a single store (lane-dense whenever 2W >= 128).
    y = yh_ref[...].reshape(bc * h2, w)
    z = jnp.dot(y, rwt, preferred_element_type=jnp.float32)       # (bc*2H, 2W)
    o_ref[...] = z.reshape(bc, h2, 2 * w).astype(o_ref.dtype)


# ----------------------------------------------------------------------------
# Wrapper
# ----------------------------------------------------------------------------
def _pyr_up_impl(x):
    """x: (N, C, H, W) float -> (N, C, 2H, 2W), same dtype (PyrUpBicubic2d)."""
    n, c, h, w = x.shape
    nc = n * c

    in_dt = x.dtype
    out_dt = in_dt                                   # preserve input dtype
    comp_dt = jnp.bfloat16 if jnp.dtype(in_dt).itemsize <= 2 else jnp.float32
    # TODO(synk): optionally force comp_dt=bf16 on v5e even for f32 inputs
    # (restores full MXU rate there); kept f32 here to preserve f32 accuracy.

    rh_np = _resize_matrix(h)                        # (2H, H)
    rwt_np = _resize_matrix(w).T                     # (W, 2W)
    rh = jnp.asarray(rh_np, comp_dt)
    rwt = jnp.asarray(np.ascontiguousarray(rwt_np), comp_dt)

    vmem_limit = _vmem_limit_bytes()
    resident = 2 * (rh_np.size + rwt_np.size) * jnp.dtype(comp_dt).itemsize
    bc, num_blocks = _choose_tiling(
        nc, h, w,
        jnp.dtype(in_dt).itemsize, jnp.dtype(out_dt).itemsize,
        jnp.dtype(comp_dt).itemsize, vmem_limit, resident)
    nc_pad = bc * num_blocks

    x2 = x.reshape(nc, h, w)
    if nc_pad != nc:                                 # pad awkward/prime N*C
        x2 = jnp.pad(x2, ((0, nc_pad - nc), (0, 0), (0, 0)))

    # NOTE: the in-kernel reshapes are pure views when 2H is a multiple of the
    # sublane tile (8 for f32, 16 for bf16); odd H stays correct but relayouts.
    # TODO(synk): for 2W < 128, pack several images along the lane axis with a
    # block-diagonal RW^T so the width matmul / output store become lane-dense.

    flops = 2 * nc_pad * (2 * h) * w * (h + 2 * w)
    bytes_accessed = (nc_pad * h * w * jnp.dtype(in_dt).itemsize
                      + nc_pad * 4 * h * w * jnp.dtype(out_dt).itemsize
                      + (rh_np.size + rwt_np.size) * jnp.dtype(comp_dt).itemsize)

    out = pl.pallas_call(
        functools.partial(_pyrup_kernel, bc=bc),
        out_shape=jax.ShapeDtypeStruct((nc_pad, 2 * h, 2 * w), out_dt),
        grid_spec=pltpu.PrefetchScalarGridSpec(
            num_scalar_prefetch=0,
            grid=(num_blocks,),
            in_specs=[
                pl.BlockSpec((2 * h, h), lambda i: (0, 0)),      # RH (constant)
                pl.BlockSpec((w, 2 * w), lambda i: (0, 0)),      # RW^T (constant)
                pl.BlockSpec((bc, h, w), lambda i: (i, 0, 0)),   # image block
            ],
            out_specs=pl.BlockSpec((bc, 2 * h, 2 * w), lambda i: (i, 0, 0)),
            scratch_shapes=[pltpu.VMEM((bc, 2 * h, w), comp_dt)],
        ),
        compiler_params=pltpu.CompilerParams(
            dimension_semantics=("parallel",),
            vmem_limit_bytes=vmem_limit,
        ),
        cost_estimate=pl.CostEstimate(flops=flops, transcendentals=0,
                                      bytes_accessed=bytes_accessed),
    )(rh, rwt, x2)

    return out[:nc].reshape(n, c, 2 * h, 2 * w)


pyr_up_bicubic2d = jax.jit(_pyr_up_impl)


# ----------------------------------------------------------------------------
# Pure-JAX reference: literal translation of the PyTorch forward (for checking)
# ----------------------------------------------------------------------------
def _reference_forward(x):
    we = jnp.asarray(_WE, jnp.float32)
    wo = jnp.asarray(_WO, jnp.float32)
    n, c, h, w = x.shape
    a = jnp.pad(x, ((0, 0), (0, 0), (2, 2), (2, 2)), mode="edge")

    def dwconv(hk, wk):
        kern = jnp.broadcast_to(jnp.outer(hk, wk)[None, None], (c, 1, 4, 4))
        return jax.lax.conv_general_dilated(
            a, kern, window_strides=(1, 1), padding="VALID",
            dimension_numbers=("NCHW", "OIHW", "NCHW"),
            feature_group_count=c)

    i00, i01 = dwconv(we, we), dwconv(we, wo)
    i10, i11 = dwconv(wo, we), dwconv(wo, wo)
    hh, ww = i11.shape[2], i11.shape[3]
    j0 = jnp.stack((i00, i01), axis=-1).reshape(n, c, hh, 2 * ww)
    j1 = jnp.stack((i10, i11), axis=-1).reshape(n, c, hh, 2 * ww)
    out = jnp.stack((j0, j1), axis=-2).reshape(n, c, 2 * hh, 2 * ww)
    return out[:, :, 1:-1, 1:-1]


if __name__ == "__main__":
    key = jax.random.PRNGKey(0)
    k1, k2 = jax.random.split(key)

    # Primary case: NCHW = (2, 4, 16, 16)
    x1 = jax.random.normal(k1, (2, 4, 16, 16), jnp.float32)
    out1 = jax.block_until_ready(pyr_up_bicubic2d(x1))
    assert out1.shape == (2, 4, 32, 32), out1.shape
    assert out1.dtype == x1.dtype
    err1 = float(jnp.max(jnp.abs(out1 - _reference_forward(x1))))
    assert err1 < 1e-2, f"max abs err vs reference: {err1}"

    # Non-divisible N*C exercises the padded-grid path.
    x2 = jax.random.normal(k2, (1, 3, 8, 24), jnp.float32)
    out2 = jax.block_until_ready(pyr_up_bicubic2d(x2))
    assert out2.shape == (1, 3, 16, 48), out2.shape
    err2 = float(jnp.max(jnp.abs(out2 - _reference_forward(x2))))
    assert err2 < 1e-2, f"max abs err vs reference: {err2}"

    assert bool(jnp.all(jnp.isfinite(out1))) and bool(jnp.all(jnp.isfinite(out2)))
    print("KERNEL_OK")
</pallas_src>

<mosaic_0001>
module attributes {stable_mosaic.version = 11 : i64} {
  func.func @_pyrup_kernel(%arg0: i32, %arg1: memref<32x16xf32, #tpu.memory_space<vmem>>, %arg2: memref<16x32xf32, #tpu.memory_space<vmem>>, %arg3: memref<4x16x16xf32, #tpu.memory_space<vmem>>, %arg4: memref<4x32x32xf32, #tpu.memory_space<vmem>>, %arg5: memref<4x32x16xf32, #tpu.memory_space<vmem>>) attributes {dimension_semantics = [#tpu.dimension_semantics<parallel>], iteration_bounds = array<i64: 2>, scalar_prefetch = 0 : i64, scratch_operands = 1 : i64, tpu.core_type = #tpu.core_type<tc>, window_params = [{pipeline_mode = #tpu.pipeline_mode<synchronous>, transform_indices = @transform_0, window_bounds = array<i64: 32, 16>}, {pipeline_mode = #tpu.pipeline_mode<synchronous>, transform_indices = @transform_1, window_bounds = array<i64: 16, 32>}, {transform_indices = @transform_2, window_bounds = array<i64: 4, 16, 16>}, {transform_indices = @transform_3, window_bounds = array<i64: 4, 32, 32>}]} {
    %c0 = arith.constant 0 : index
    %c0_0 = arith.constant 0 : index
    %0 = vector.load %arg1[%c0, %c0_0] : memref<32x16xf32, #tpu.memory_space<vmem>>, vector<32x16xf32>
    %c0_1 = arith.constant 0 : index
    %c0_2 = arith.constant 0 : index
    %1 = vector.load %arg2[%c0_1, %c0_2] : memref<16x32xf32, #tpu.memory_space<vmem>>, vector<16x32xf32>
    %c0_i32 = arith.constant 0 : i32
    %2 = arith.index_cast %c0_i32 : i32 to index
    %c0_3 = arith.constant 0 : index
    %c0_4 = arith.constant 0 : index
    %3 = vector.load %arg3[%2, %c0_3, %c0_4] : memref<4x16x16xf32, #tpu.memory_space<vmem>>, vector<1x16x16xf32>
    %4 = vector.shape_cast %3 : vector<1x16x16xf32> to vector<16x16xf32>
    %cst = arith.constant dense<0.000000e+00> : vector<32x16xf32>
    %5 = tpu.matmul %0, %4, %cst {dimension_numbers = #tpu.dot_dimension_numbers<[1], [0], [0], [1], [0, 0, 1, 1], [], []>} : vector<32x16xf32>, vector<16x16xf32>, vector<32x16xf32> -> vector<32x16xf32>
    %6 = arith.index_cast %c0_i32 : i32 to index
    %c0_5 = arith.constant 0 : index
    %c0_6 = arith.constant 0 : index
    %7 = vector.load %arg5[%6, %c0_5, %c0_6] : memref<4x32x16xf32, #tpu.memory_space<vmem>>, vector<1x32x16xf32>
    %8 = vector.shape_cast %7 : vector<1x32x16xf32> to vector<32x16xf32>
    %9 = vector.shape_cast %5 : vector<32x16xf32> to vector<1x32x16xf32>
    tpu.vector_store %arg5[%6, %c0_5, %c0_6], %9 {strides = array<i32>} : memref<4x32x16xf32, #tpu.memory_space<vmem>>, vector<1x32x16xf32>,
    %c1_i32 = arith.constant 1 : i32
    %10 = arith.index_cast %c1_i32 : i32 to index
    %c0_7 = arith.constant 0 : index
    %c0_8 = arith.constant 0 : index
    %11 = vector.load %arg3[%10, %c0_7, %c0_8] : memref<4x16x16xf32, #tpu.memory_space<vmem>>, vector<1x16x16xf32>
    %12 = vector.shape_cast %11 : vector<1x16x16xf32> to vector<16x16xf32>
    %cst_9 = arith.constant dense<0.000000e+00> : vector<32x16xf32>
    %13 = tpu.matmul %0, %12, %cst_9 {dimension_numbers = #tpu.dot_dimension_numbers<[1], [0], [0], [1], [0, 0, 1, 1], [], []>} : vector<32x16xf32>, vector<16x16xf32>, vector<32x16xf32> -> vector<32x16xf32>
    %14 = arith.index_cast %c1_i32 : i32 to index
    %c0_10 = arith.constant 0 : index
    %c0_11 = arith.constant 0 : index
    %15 = vector.load %arg5[%14, %c0_10, %c0_11] : memref<4x32x16xf32, #tpu.memory_space<vmem>>, vector<1x32x16xf32>
    %16 = vector.shape_cast %15 : vector<1x32x16xf32> to vector<32x16xf32>
    %17 = vector.shape_cast %13 : vector<32x16xf32> to vector<1x32x16xf32>
    tpu.vector_store %arg5[%14, %c0_10, %c0_11], %17 {strides = array<i32>} : memref<4x32x16xf32, #tpu.memory_space<vmem>>, vector<1x32x16xf32>,
    %c2_i32 = arith.constant 2 : i32
    %18 = arith.index_cast %c2_i32 : i32 to index
    %c0_12 = arith.constant 0 : index
    %c0_13 = arith.constant 0 : index
    %19 = vector.load %arg3[%18, %c0_12, %c0_13] : memref<4x16x16xf32, #tpu.memory_space<vmem>>, vector<1x16x16xf32>
    %20 = vector.shape_cast %19 : vector<1x16x16xf32> to vector<16x16xf32>
    %cst_14 = arith.constant dense<0.000000e+00> : vector<32x16xf32>
    %21 = tpu.matmul %0, %20, %cst_14 {dimension_numbers = #tpu.dot_dimension_numbers<[1], [0], [0], [1], [0, 0, 1, 1], [], []>} : vector<32x16xf32>, vector<16x16xf32>, vector<32x16xf32> -> vector<32x16xf32>
    %22 = arith.index_cast %c2_i32 : i32 to index
    %c0_15 = arith.constant 0 : index
    %c0_16 = arith.constant 0 : index
    %23 = vector.load %arg5[%22, %c0_15, %c0_16] : memref<4x32x16xf32, #tpu.memory_space<vmem>>, vector<1x32x16xf32>
    %24 = vector.shape_cast %23 : vector<1x32x16xf32> to vector<32x16xf32>
    %25 = vector.shape_cast %21 : vector<32x16xf32> to vector<1x32x16xf32>
    tpu.vector_store %arg5[%22, %c0_15, %c0_16], %25 {strides = array<i32>} : memref<4x32x16xf32, #tpu.memory_space<vmem>>, vector<1x32x16xf32>,
    %c3_i32 = arith.constant 3 : i32
    %26 = arith.index_cast %c3_i32 : i32 to index
    %c0_17 = arith.constant 0 : index
    %c0_18 = arith.constant 0 : index
    %27 = vector.load %arg3[%26, %c0_17, %c0_18] : memref<4x16x16xf32, #tpu.memory_space<vmem>>, vector<1x16x16xf32>
    %28 = vector.shape_cast %27 : vector<1x16x16xf32> to vector<16x16xf32>
    %cst_19 = arith.constant dense<0.000000e+00> : vector<32x16xf32>
    %29 = tpu.matmul %0, %28, %cst_19 {dimension_numbers = #tpu.dot_dimension_numbers<[1], [0], [0], [1], [0, 0, 1, 1], [], []>} : vector<32x16xf32>, vector<16x16xf32>, vector<32x16xf32> -> vector<32x16xf32>
    %30 = arith.index_cast %c3_i32 : i32 to index
    %c0_20 = arith.constant 0 : index
    %c0_21 = arith.constant 0 : index
    %31 = vector.load %arg5[%30, %c0_20, %c0_21] : memref<4x32x16xf32, #tpu.memory_space<vmem>>, vector<1x32x16xf32>
    %32 = vector.shape_cast %31 : vector<1x32x16xf32> to vector<32x16xf32>
    %33 = vector.shape_cast %29 : vector<32x16xf32> to vector<1x32x16xf32>
    tpu.vector_store %arg5[%30, %c0_20, %c0_21], %33 {strides = array<i32>} : memref<4x32x16xf32, #tpu.memory_space<vmem>>, vector<1x32x16xf32>,
    %c4_i32 = arith.constant 4 : i32
    %c0_22 = arith.constant 0 : index
    %c0_23 = arith.constant 0 : index
    %c0_24 = arith.constant 0 : index
    %34 = vector.load %arg5[%c0_22, %c0_23, %c0_24] : memref<4x32x16xf32, #tpu.memory_space<vmem>>, vector<4x32x16xf32>
    %35 = vector.shape_cast %34 : vector<4x32x16xf32> to vector<128x16xf32>
    %cst_25 = arith.constant dense<0.000000e+00> : vector<128x32xf32>
    %36 = tpu.matmul %35, %1, %cst_25 {dimension_numbers = #tpu.dot_dimension_numbers<[1], [0], [0], [1], [0, 0, 1, 1], [], []>} : vector<128x16xf32>, vector<16x32xf32>, vector<128x32xf32> -> vector<128x32xf32>
    %37 = vector.shape_cast %36 : vector<128x32xf32> to vector<4x32x32xf32>
    %c0_26 = arith.constant 0 : index
    %c0_27 = arith.constant 0 : index
    %c0_28 = arith.constant 0 : index
    %38 = vector.load %arg4[%c0_26, %c0_27, %c0_28] : memref<4x32x32xf32, #tpu.memory_space<vmem>>, vector<4x32x32xf32>
    tpu.vector_store %arg4[%c0_26, %c0_27, %c0_28], %37 {strides = array<i32>} : memref<4x32x32xf32, #tpu.memory_space<vmem>>, vector<4x32x32xf32>,
    return
  }
  func.func @transform_0(%arg0: i32) -> (i32, i32) {
    %c0_i32 = arith.constant 0 : i32
    %c0_i32_0 = arith.constant 0 : i32
    %c0_i32_1 = arith.constant 0 : i32
    return %c0_i32, %c0_i32_0 : i32, i32
  }
  func.func @transform_1(%arg0: i32) -> (i32, i32) {
    %c0_i32 = arith.constant 0 : i32
    %c0_i32_0 = arith.constant 0 : i32
    %c0_i32_1 = arith.constant 0 : i32
    return %c0_i32, %c0_i32_0 : i32, i32
  }
  func.func @transform_2(%arg0: i32) -> (i32, i32, i32) {
    %c0_i32 = arith.constant 0 : i32
    %c0_i32_0 = arith.constant 0 : i32
    %c0_i32_1 = arith.constant 0 : i32
    return %arg0, %c0_i32, %c0_i32_0 : i32, i32, i32
  }
  func.func @transform_3(%arg0: i32) -> (i32, i32, i32) {
    %c0_i32 = arith.constant 0 : i32
    %c0_i32_0 = arith.constant 0 : i32
    %c0_i32_1 = arith.constant 0 : i32
    return %arg0, %c0_i32, %c0_i32_0 : i32, i32, i32
  }
}

</mosaic_0001>

<llo_original>
// kernel: _pyr_up_impl.1
$region0: #{_pyr_up_impl.1}
  #allocation0 [shape = 'u32[]', space=smem, size = 0x4, offset = 0x4, fixed_abs, tag = 'smem constant byte address 0x4 - core index']
  #allocation1 [shape = 'u32[144,128]{1,0:T(1,128)}', space=vmem, size = 0x12000, scoped, tag = 'internal scratch']
  #allocation2 [shape = 'f32[4,32,16]{2,1,0:T(8,128)}', space=vmem, size = 0x10000, scoped, tag = 'scratch operand']
  %s0 = inlined_call_operand.hbm [shape: f32[32,16], index: 0, kind: input, shape index: {}]
  %s1 = inlined_call_operand.hbm [shape: f32[16,32], index: 1, kind: input, shape index: {}]
  %s2 = inlined_call_operand.hbm [shape: f32[8,16,16], index: 2, kind: input, shape index: {}]
  %s3 = inlined_call_operand.hbm [shape: f32[8,32,32], index: 3, kind: output, shape index: {}]
  %s4 = sld [smem:[#allocation0]]
  $region57: #{_pyr_up_impl.1} parent=0
    _
  %s6 = ssub.s32 1, %s4
  %s7 = scalar_select 0, %s6, %s4
  $region1: #{_pyr_up_impl.1} parent=0
    #allocation3 [shape = 'u8[16384]{0}', space=vmem, size = 0x4000, scoped, tag = 'input window, operand 0, single buffered']
    #allocation4 [shape = 's32[2]{0}', space=sflag, size = 0x8, scoped, tag = 'scoped memory for _pyr_up_impl.1']
    #allocation5 [shape = 's32[2]{0}', space=sflag, size = 0x8, scoped, tag = 'scoped memory for _pyr_up_impl.1']
    #allocation6 [shape = 'u8[8192]{0}', space=vmem, size = 0x2000, scoped, tag = 'input window, operand 1, single buffered']
    #allocation7 [shape = 's32[1]{0}', space=sflag, size = 0x4, scoped, tag = 'scoped memory for _pyr_up_impl.1']
    #allocation8 [shape = 'u8[65536]{0}', space=vmem, size = 0x10000, scoped, tag = 'input window, operand 2']
    #allocation9 [shape = 'u8[131072]{0}', space=vmem, size = 0x20000, scoped, tag = 'output window, operand 0']
    %8 = vsyncpa [#allocation4], 0
    %9 = vsyncpa [#allocation7], 0
    %10 = vsyncpa [#allocation5], 0
    %s11 = scalar_lea.sflag [#allocation5], 1
    %12 = vsyncpa %s11, 0
    loop: start=0, step=1, limit=4
    $region2: #{_pyr_up_impl.1} parent=1 // loop_pre_header
      _
    $region3: #{_pyr_up_impl.1} parent=1 // loop_header
      %s14 = sphi 0, %s18
      %p15 = scmp.ge.s32.totalorder %s14, 4
      %s22 = sphi 0, %s22
      %s24 = sphi 0, %s22
      %s25 = sphi 0, %s24
      %s39 = sphi 0, %s25
      %s43 = sphi 0, %s43
      %s45 = sphi 0, %s43
      %s46 = sphi 0, %s45
      %s60 = sphi 0, %s46
      %s66 = sphi 0, %s68
      %s69 = sphi 0, %s66
      %s70 = sphi 0, %s69
      %s86 = sphi 0, %s70
      %s92 = sphi 0, %s94
      %s95 = sphi 0, %s92
      %s96 = sphi 0, %s95
      %s112 = sphi 0, %s96
    $region4: #{_pyr_up_impl.1} parent=1 // loop_header_branch
      %17 = sbr.rel (%p15) target = $region8
    $region5: #{_pyr_up_impl.1} parent=1 // loop_body
      %s19 = ssub.s32 %s14, 1
      %s20 = ssub.s32 %s14, 2
      %s21 = sadd.s32 %s14, 1
      %s23 = sadd.s32 %s22, 1
      %p26 = scmp.eq.s32.totalorder %s14, 1
      %p27 = scmp.ne.s32.totalorder %s22, %s24
      %p28 = scmp.eq.s32.totalorder %s14, 0
      %p29 = por %p27, %p28
      %p30 = scmp.ne.s32.totalorder %s22, %s24
      %p31 = scmp.eq.s32.totalorder %s19, 1
      %p32 = por %p30, %p31
      %p33 = scmp.ne.s32.totalorder %s24, %s25
      %p34 = scmp.eq.s32.totalorder %s19, 0
      %p35 = por %p33, %p34
      %p36 = scmp.ne.s32.totalorder %s24, %s25
      %p37 = scmp.eq.s32.totalorder %s20, 1
      %p38 = por %p36, %p37
      %p40 = scmp.ne.s32.totalorder %s25, %s39
      %p41 = scmp.eq.s32.totalorder %s20, 0
      %p42 = por %p40, %p41
      %s44 = sadd.s32 %s43, 1
      %p47 = scmp.eq.s32.totalorder %s14, 1
      %p48 = scmp.ne.s32.totalorder %s43, %s45
      %p49 = scmp.eq.s32.totalorder %s14, 0
      %p50 = por %p48, %p49
      %p51 = scmp.ne.s32.totalorder %s43, %s45
      %p52 = scmp.eq.s32.totalorder %s19, 1
      %p53 = por %p51, %p52
      %p54 = scmp.ne.s32.totalorder %s45, %s46
      %p55 = scmp.eq.s32.totalorder %s19, 0
      %p56 = por %p54, %p55
      %p57 = scmp.ne.s32.totalorder %s45, %s46
      %p58 = scmp.eq.s32.totalorder %s20, 1
      %p59 = por %p57, %p58
      %p61 = scmp.ne.s32.totalorder %s46, %s60
      %p62 = scmp.eq.s32.totalorder %s20, 0
      %p63 = por %p61, %p62
      %s64 = ssub.s32 %s14, %s21
      %p65 = scmp.eq.s32.totalorder %s64, 0
      %s67 = sadd.s32 %s66, 1
      %s68 = scalar_select %p65, %s66, %s67
      %p71 = pneg %p65
      %p72 = scmp.eq.s32.totalorder %s14, 1
      %p73 = por %p71, %p72
      %p74 = scmp.ne.s32.totalorder %s66, %s69
      %p75 = scmp.eq.s32.totalorder %s14, 0
      %p76 = por %p74, %p75
      %p77 = scmp.ne.s32.totalorder %s66, %s69
      %p78 = scmp.eq.s32.totalorder %s19, 1
      %p79 = por %p77, %p78
      %p80 = scmp.ne.s32.totalorder %s69, %s70
      %p81 = scmp.eq.s32.totalorder %s19, 0
      %p82 = por %p80, %p81
      %p83 = scmp.ne.s32.totalorder %s69, %s70
      %p84 = scmp.eq.s32.totalorder %s20, 1
      %p85 = por %p83, %p84
      %p87 = scmp.ne.s32.totalorder %s70, %s86
      %p88 = scmp.eq.s32.totalorder %s20, 0
      %p89 = por %p87, %p88
      %s90 = ssub.s32 %s14, %s21
      %p91 = scmp.eq.s32.totalorder %s90, 0
      %s93 = sadd.s32 %s92, 1
      %s94 = scalar_select %p91, %s92, %s93
      %p97 = pneg %p91
      %p98 = scmp.eq.s32.totalorder %s14, 1
      %p99 = por %p97, %p98
      %p100 = scmp.ne.s32.totalorder %s92, %s95
      %p101 = scmp.eq.s32.totalorder %s14, 0
      %p102 = por %p100, %p101
      %p103 = scmp.ne.s32.totalorder %s92, %s95
      %p104 = scmp.eq.s32.totalorder %s19, 1
      %p105 = por %p103, %p104
      %p106 = scmp.ne.s32.totalorder %s95, %s96
      %p107 = scmp.eq.s32.totalorder %s19, 0
      %p108 = por %p106, %p107
      %p109 = scmp.ne.s32.totalorder %s95, %s96
      %p110 = scmp.eq.s32.totalorder %s20, 1
      %p111 = por %p109, %p110
      %p113 = scmp.ne.s32.totalorder %s96, %s112
      %p114 = scmp.eq.s32.totalorder %s20, 0
      %p115 = por %p113, %p114
      %p116 = scmp.le.s32.totalorder 1, %s14
      %p117 = scmp.lt.s32.totalorder %s14, 3
      %p118 = pnand %p116, %p117
      %p119 = pneg %p118
      // Predicated region
      $region9: #{_pyr_up_impl.1} parent=5 // pred_check
        _
      $region10: #{_pyr_up_impl.1} parent=5 // pred_check_branch
        %121 = sbr.rel (%p118) target = $region12
      $region11: #{_pyr_up_impl.1} parent=5 // pred_region
        %s122 = ssub.s32 %s14, 1
        // Predicated region
        $region13: #{_pyr_up_impl.1} parent=11 // pred_check
          %p123 = pneg %p35
        $region14: #{_pyr_up_impl.1} parent=11 // pred_check_branch
          %125 = sbr.rel (%p123) target = $region16
        $region15: #{_pyr_up_impl.1} parent=11 // pred_region
          %s127 = ssub.s32 512, 512
          %128 = vsyncadd [#allocation4], %s127
          %s129 = sshll.u32 [#allocation3], 4
          %s130 = int_to_ptr.vmem [resolvable:$true] %s129
          %135 = dma.hbm_to_vmem [thread:$0]  %s0, 512, %s130, [#allocation4], 128, 128, 8
        $region16: #{_pyr_up_impl.1} parent=11 // pred_fallthru
          _
        // Predicated region
        $region17: #{_pyr_up_impl.1} parent=11 // pred_check
          %p136 = pneg %p56
        $region18: #{_pyr_up_impl.1} parent=11 // pred_check_branch
          %138 = sbr.rel (%p136) target = $region20
        $region19: #{_pyr_up_impl.1} parent=11 // pred_region
          %s140 = ssub.s32 256, 256
          %141 = vsyncadd [#allocation7], %s140
          %s142 = sshll.u32 [#allocation6], 4
          %s143 = int_to_ptr.vmem [resolvable:$true] %s142
          %148 = dma.hbm_to_vmem [thread:$0]  %s1, 256, %s143, [#allocation7], 128, 128, 8
        $region20: #{_pyr_up_impl.1} parent=11 // pred_fallthru
          _
      $region12: #{_pyr_up_impl.1} parent=5 // pred_fallthru
        _
      %p149 = scmp.lt.s32.totalorder %s14, 2
      // Predicated region
      $region21: #{_pyr_up_impl.1} parent=5 // pred_check
        %p150 = pneg %p149
      $region22: #{_pyr_up_impl.1} parent=5 // pred_check_branch
        %152 = sbr.rel (%p150) target = $region24
      $region23: #{_pyr_up_impl.1} parent=5 // pred_region
        // Predicated region
        $region25: #{_pyr_up_impl.1} parent=23 // pred_check
          %p153 = pneg %p76
        $region26: #{_pyr_up_impl.1} parent=23 // pred_check_branch
          %155 = sbr.rel (%p153) target = $region28
        $region27: #{_pyr_up_impl.1} parent=23 // pred_region
          %s156 = sand.u32 %s14, 1
          %s157 = scalar_lea.sflag [#allocation4], %s156
          %s158 = sand.u32 %s66, 1
          %s159 = smul.addr %s158, 64
          %s160 = scalar_lea.vmem [#allocation8], %s159
          %s161 = smul.u32 4, %s14
          %s163 = ssub.s32 1024, 1024
          %164 = vsyncadd %s157, %s163
          %s165 = smul.addr %s161, 2
          %s166 = smul.addr %s165, 128
          %s167 = scalar_lea.hbm %s2, %s166
          %s168 = sshll.u32 %s160, 4
          %s169 = int_to_ptr.vmem [resolvable:$true] %s168
          %174 = dma.hbm_to_vmem [thread:$0]  %s167, 1024, %s169, %s157, 128, 128, 8
        $region28: #{_pyr_up_impl.1} parent=23 // pred_fallthru
          _
      $region24: #{_pyr_up_impl.1} parent=5 // pred_fallthru
        _
      %p175 = scmp.le.s32.totalorder 1, %s14
      %p176 = scmp.lt.s32.totalorder %s14, 3
      %p177 = pnand %p175, %p176
      %p178 = pneg %p177
      // Predicated region
      $region29: #{_pyr_up_impl.1} parent=5 // pred_check
        _
      $region30: #{_pyr_up_impl.1} parent=5 // pred_check_branch
        %180 = sbr.rel (%p177) target = $region32
      $region31: #{_pyr_up_impl.1} parent=5 // pred_region
        %s181 = ssub.s32 %s14, 1
        // Predicated region
        $region33: #{_pyr_up_impl.1} parent=31 // pred_check
          %p182 = pneg %p35
        $region34: #{_pyr_up_impl.1} parent=31 // pred_check_branch
          %184 = sbr.rel (%p182) target = $region36
        $region35: #{_pyr_up_impl.1} parent=31 // pred_region
          %185 = dma.done [#allocation4], 512
        $region36: #{_pyr_up_impl.1} parent=31 // pred_fallthru
          _
        // Predicated region
        $region37: #{_pyr_up_impl.1} parent=31 // pred_check
          %p186 = pneg %p56
        $region38: #{_pyr_up_impl.1} parent=31 // pred_check_branch
          %188 = sbr.rel (%p186) target = $region40
        $region39: #{_pyr_up_impl.1} parent=31 // pred_region
          %189 = dma.done [#allocation7], 256
        $region40: #{_pyr_up_impl.1} parent=31 // pred_fallthru
          _
        %s190 = sand.u32 %s19, 1
        %s191 = scalar_lea.sflag [#allocation4], %s190
        %s192 = sand.u32 %s69, 1
        %s193 = smul.addr %s192, 64
        %s194 = scalar_lea.vmem [#allocation8], %s193
        // Predicated region
        $region41: #{_pyr_up_impl.1} parent=31 // pred_check
          %p195 = pneg %p82
        $region42: #{_pyr_up_impl.1} parent=31 // pred_check_branch
          %197 = sbr.rel (%p195) target = $region44
        $region43: #{_pyr_up_impl.1} parent=31 // pred_region
          %198 = dma.done %s191, 1024
        $region44: #{_pyr_up_impl.1} parent=31 // pred_fallthru
          _
        %p199 = pneg %p35
        %p200 = pneg %p32
        %p201 = pneg %p56
        %p202 = pneg %p53
        %s203 = sand.u32 %s19, 1
        %s204 = scalar_lea.sflag [#allocation4], %s203
        %s205 = sand.u32 %s69, 1
        %s206 = smul.addr %s205, 64
        %s207 = scalar_lea.vmem [#allocation8], %s206
        %p208 = pneg %p82
        %p209 = pneg %p79
        %p210 = pneg %p108
        %p211 = pneg %p105
        %s212 = sand.u32 %s95, 1
        %s213 = scalar_lea.sflag [#allocation5], %s212
        %s214 = sand.u32 %s95, 1
        %s215 = smul.addr %s214, 128
        %s216 = scalar_lea.vmem [#allocation9], %s215
        %s217 = smul.u32 4, %s19
        %s218 = smul.u32 4, %s19
        %v219 = vld [vmem:[#allocation3] sm:$0xff]
        %v220 = vld [vmem:[#allocation3 + $0x8] sm:$0xff]
        %v221 = vld [vmem:[#allocation3 + $0x10] sm:$0xff]
        %v222 = vld [vmem:[#allocation3 + $0x18] sm:$0xff]
        %v223 = vld [vmem:[#allocation6] sm:$0xff]
        %v224 = vld [vmem:[#allocation6 + $0x8] sm:$0xff]
        %v225 = vld [vmem:[%s194] sm:$0xff]
        %v226 = vld [vmem:[%s194 + $0x8] sm:$0xff]
        %vm227 = vcmask 130048
        %v229 = vsel %vm227, %v219, 0
        %v232 = vsel %vm227, %v220, 0
        %v235 = vsel %vm227, %v221, 0
        %v238 = vsel %vm227, %v222, 0
        %240 = vmatprep.subr.mxu0 0.0
        %241 = vmatpush1.msra.mxu0 %v225
        %242 = vmatprep.subr.mxu0 0.0
        %243 = vmatpush1.msra.mxu0 %v226
        %244 = vmatprep.subr.mxu0 0.0
        %245 = vmatpush1.msra.mxu0 0.0
        %246 = vmatprep.subr.mxu0 0.0
        %247 = vmatpush1.msra.mxu0 0.0
        %248 = vmatprep.subr.mxu0 0.0
        %249 = vmatpush1.msra.mxu0 0.0
        %250 = vmatprep.subr.mxu0 0.0
        %251 = vmatpush1.msra.mxu0 0.0
        %252 = vmatprep.subr.mxu0 0.0
        %253 = vmatpush1.msra.mxu0 0.0
        %254 = vmatprep.subr.mxu0 0.0
        %255 = vmatpush1.msra.mxu0 0.0
        %256 = vmatprep.subr.mxu0 0.0
        %257 = vmatpush1.msra.mxu0 0.0
        %258 = vmatprep.subr.mxu0 0.0
        %259 = vmatpush1.msra.mxu0 0.0
        %260 = vmatprep.subr.mxu0 0.0
        %261 = vmatpush1.msra.mxu0 0.0
        %262 = vmatprep.subr.mxu0 0.0
        %263 = vmatpush1.msra.mxu0 0.0
        %264 = vmatprep.subr.mxu0 0.0
        %265 = vmatpush1.msra.mxu0 0.0
        %266 = vmatprep.subr.mxu0 0.0
        %267 = vmatpush1.msra.mxu0 0.0
        %268 = vmatprep.subr.mxu0 0.0
        %269 = vmatpush1.msra.mxu0 0.0
        %270 = vmatprep.subr.mxu0 0.0
        %271 = vmatpush1.msra.mxu0 0.0
        %272 = vmatprep.subr.mxu0 0.0
        %273 = vmatpush1.msra.mxu0 0.0
        %274 = vmatprep.subr.mxu0 0.0
        %275 = vmatpush1.msra.mxu0 0.0
        %276 = vmatprep.subr.mxu0 0.0
        %277 = vmatpush1.msra.mxu0 0.0
        %278 = vmatprep.subr.mxu0 0.0
        %279 = vmatpush1.msra.mxu0 0.0
        %280 = vmatprep.subr.mxu0 0.0
        %281 = vmatpush1.msra.mxu0 0.0
        %282 = vmatprep.subr.mxu0 0.0
        %283 = vmatpush1.msra.mxu0 0.0
        %284 = vmatprep.subr.mxu0 0.0
        %285 = vmatpush1.msra.mxu0 0.0
        %286 = vmatprep.subr.mxu0 0.0
        %287 = vmatpush1.msra.mxu0 0.0
        %288 = vmatprep.subr.mxu0 0.0
        %289 = vmatpush1.msra.mxu0 0.0
        %290 = vmatprep.subr.mxu0 0.0
        %291 = vmatpush1.msra.mxu0 0.0
        %292 = vmatprep.subr.mxu0 0.0
        %293 = vmatpush1.msra.mxu0 0.0
        %294 = vmatprep.subr.mxu0 0.0
        %295 = vmatpush1.msra.mxu0 0.0
        %296 = vmatprep.subr.mxu0 0.0
        %297 = vmatpush1.msra.mxu0 0.0
        %298 = vmatprep.subr.mxu0 0.0
        %299 = vmatpush1.msra.mxu0 0.0
        %300 = vmatprep.subr.mxu0 0.0
        %301 = vmatpush1.msra.mxu0 0.0
        %302 = vmatprep.subr.mxu0 0.0
        %303 = vmatpush1.msra.mxu0 0.0
        %304 = vmatprep.mubr.f32.mxu0 0.0
        %305 = vmatmul.mubr.f32.gmra.mrb[0].mxu0 %v229
        %v306 = vpop.f32.mrb[0].mxu0
        %v307 = vadd.f32 0.0, %v306
        %v308 = vpop.f32.mrb[0].mxu0
        %309 = vmatprep.mubr.f32.mxu0 0.0
        %310 = vmatmul.mubr.f32.gmra.mrb[0].mxu0 %v232
        %v311 = vpop.f32.mrb[0].mxu0
        %v312 = vadd.f32 0.0, %v311
        %v313 = vpop.f32.mrb[0].mxu0
        %314 = vmatprep.mubr.f32.mxu0 0.0
        %315 = vmatmul.mubr.f32.gmra.mrb[0].mxu0 %v235
        %v316 = vpop.f32.mrb[0].mxu0
        %v317 = vadd.f32 0.0, %v316
        %v318 = vpop.f32.mrb[0].mxu0
        %319 = vmatprep.mubr.f32.mxu0 0.0
        %320 = vmatmul.mubr.f32.gmra.mrb[0].mxu0 %v238
        %v321 = vpop.f32.mrb[0].mxu0
        %v322 = vadd.f32 0.0, %v321
        %v323 = vpop.f32.mrb[0].mxu0
        %324 = vdwg.mxu0
        %325 = vst.msk [vmem:[#allocation2] sm:$0xff] %vm227, %v307
        %326 = vst.msk [vmem:[#allocation2 + $0x8] sm:$0xff] %vm227, %v312
        %327 = vst.msk [vmem:[#allocation2 + $0x10] sm:$0xff] %vm227, %v317
        %328 = vst.msk [vmem:[#allocation2 + $0x18] sm:$0xff] %vm227, %v322
        %s329 = scalar_lea.vmem %s194, 16 [#allocation8]
        %v330 = vld [vmem:[%s329] sm:$0xff]
        %v331 = vld [vmem:[%s329 + $0x8] sm:$0xff]
        %332 = vmatprep.subr.mxu0 0.0
        %333 = vmatpush1.msra.mxu0 %v330
        %334 = vmatprep.subr.mxu0 0.0
        %335 = vmatpush1.msra.mxu0 %v331
        %336 = vmatprep.subr.mxu0 0.0
        %337 = vmatpush1.msra.mxu0 0.0
        %338 = vmatprep.subr.mxu0 0.0
        %339 = vmatpush1.msra.mxu0 0.0
        %340 = vmatprep.subr.mxu0 0.0
        %341 = vmatpush1.msra.mxu0 0.0
        %342 = vmatprep.subr.mxu0 0.0
        %343 = vmatpush1.msra.mxu0 0.0
        %344 = vmatprep.subr.mxu0 0.0
        %345 = vmatpush1.msra.mxu0 0.0
        %346 = vmatprep.subr.mxu0 0.0
        %347 = vmatpush1.msra.mxu0 0.0
        %348 = vmatprep.subr.mxu0 0.0
        %349 = vmatpush1.msra.mxu0 0.0
        %350 = vmatprep.subr.mxu0 0.0
        %351 = vmatpush1.msra.mxu0 0.0
        %352 = vmatprep.subr.mxu0 0.0
        %353 = vmatpush1.msra.mxu0 0.0
        %354 = vmatprep.subr.mxu0 0.0
        %355 = vmatpush1.msra.mxu0 0.0
        %356 = vmatprep.subr.mxu0 0.0
        %357 = vmatpush1.msra.mxu0 0.0
        %358 = vmatprep.subr.mxu0 0.0
        %359 = vmatpush1.msra.mxu0 0.0
        %360 = vmatprep.subr.mxu0 0.0
        %361 = vmatpush1.msra.mxu0 0.0
        %362 = vmatprep.subr.mxu0 0.0
        %363 = vmatpush1.msra.mxu0 0.0
        %364 = vmatprep.subr.mxu0 0.0
        %365 = vmatpush1.msra.mxu0 0.0
        %366 = vmatprep.subr.mxu0 0.0
        %367 = vmatpush1.msra.mxu0 0.0
        %368 = vmatprep.subr.mxu0 0.0
        %369 = vmatpush1.msra.mxu0 0.0
        %370 = vmatprep.subr.mxu0 0.0
        %371 = vmatpush1.msra.mxu0 0.0
        %372 = vmatprep.subr.mxu0 0.0
        %373 = vmatpush1.msra.mxu0 0.0
        %374 = vmatprep.subr.mxu0 0.0
        %375 = vmatpush1.msra.mxu0 0.0
        %376 = vmatprep.subr.mxu0 0.0
        %377 = vmatpush1.msra.mxu0 0.0
        %378 = vmatprep.subr.mxu0 0.0
        %379 = vmatpush1.msra.mxu0 0.0
        %380 = vmatprep.subr.mxu0 0.0
        %381 = vmatpush1.msra.mxu0 0.0
        %382 = vmatprep.subr.mxu0 0.0
        %383 = vmatpush1.msra.mxu0 0.0
        %384 = vmatprep.subr.mxu0 0.0
        %385 = vmatpush1.msra.mxu0 0.0
        %386 = vmatprep.subr.mxu0 0.0
        %387 = vmatpush1.msra.mxu0 0.0
        %388 = vmatprep.subr.mxu0 0.0
        %389 = vmatpush1.msra.mxu0 0.0
        %390 = vmatprep.subr.mxu0 0.0
        %391 = vmatpush1.msra.mxu0 0.0
        %392 = vmatprep.subr.mxu0 0.0
        %393 = vmatpush1.msra.mxu0 0.0
        %394 = vmatprep.subr.mxu0 0.0
        %395 = vmatpush1.msra.mxu0 0.0
        %396 = vmatprep.mubr.f32.mxu0 0.0
        %397 = vmatmul.mubr.f32.gmra.mrb[0].mxu0 %v229
        %v398 = vpop.f32.mrb[0].mxu0
        %v399 = vadd.f32 0.0, %v398
        %v400 = vpop.f32.mrb[0].mxu0
        %401 = vmatprep.mubr.f32.mxu0 0.0
        %402 = vmatmul.mubr.f32.gmra.mrb[0].mxu0 %v232
        %v403 = vpop.f32.mrb[0].mxu0
        %v404 = vadd.f32 0.0, %v403
        %v405 = vpop.f32.mrb[0].mxu0
        %406 = vmatprep.mubr.f32.mxu0 0.0
        %407 = vmatmul.mubr.f32.gmra.mrb[0].mxu0 %v235
        %v408 = vpop.f32.mrb[0].mxu0
        %v409 = vadd.f32 0.0, %v408
        %v410 = vpop.f32.mrb[0].mxu0
        %411 = vmatprep.mubr.f32.mxu0 0.0
        %412 = vmatmul.mubr.f32.gmra.mrb[0].mxu0 %v238
        %v413 = vpop.f32.mrb[0].mxu0
        %v414 = vadd.f32 0.0, %v413
        %v415 = vpop.f32.mrb[0].mxu0
        %416 = vdwg.mxu0
        %s417 = scalar_lea.vmem [#allocation2], 32
        %418 = vst.msk [vmem:[%s417] sm:$0xff] %vm227, %v399
        %419 = vst.msk [vmem:[%s417 + $0x8] sm:$0xff] %vm227, %v404
        %420 = vst.msk [vmem:[%s417 + $0x10] sm:$0xff] %vm227, %v409
        %421 = vst.msk [vmem:[%s417 + $0x18] sm:$0xff] %vm227, %v414
        %s422 = scalar_lea.vmem %s194, 32 [#allocation8]
        %v423 = vld [vmem:[%s422] sm:$0xff]
        %v424 = vld [vmem:[%s422 + $0x8] sm:$0xff]
        %425 = vmatprep.subr.mxu0 0.0
        %426 = vmatpush1.msra.mxu0 %v423
        %427 = vmatprep.subr.mxu0 0.0
        %428 = vmatpush1.msra.mxu0 %v424
        %429 = vmatprep.subr.mxu0 0.0
        %430 = vmatpush1.msra.mxu0 0.0
        %431 = vmatprep.subr.mxu0 0.0
        %432 = vmatpush1.msra.mxu0 0.0
        %433 = vmatprep.subr.mxu0 0.0
        %434 = vmatpush1.msra.mxu0 0.0
        %435 = vmatprep.subr.mxu0 0.0
        %436 = vmatpush1.msra.mxu0 0.0
        %437 = vmatprep.subr.mxu0 0.0
        %438 = vmatpush1.msra.mxu0 0.0
        %439 = vmatprep.subr.mxu0 0.0
        %440 = vmatpush1.msra.mxu0 0.0
        %441 = vmatprep.subr.mxu0 0.0
        %442 = vmatpush1.msra.mxu0 0.0
        %443 = vmatprep.subr.mxu0 0.0
        %444 = vmatpush1.msra.mxu0 0.0
        %445 = vmatprep.subr.mxu0 0.0
        %446 = vmatpush1.msra.mxu0 0.0
        %447 = vmatprep.subr.mxu0 0.0
        %448 = vmatpush1.msra.mxu0 0.0
        %449 = vmatprep.subr.mxu0 0.0
        %450 = vmatpush1.msra.mxu0 0.0
        %451 = vmatprep.subr.mxu0 0.0
        %452 = vmatpush1.msra.mxu0 0.0
        %453 = vmatprep.subr.mxu0 0.0
        %454 = vmatpush1.msra.mxu0 0.0
        %455 = vmatprep.subr.mxu0 0.0
        %456 = vmatpush1.msra.mxu0 0.0
        %457 = vmatprep.subr.mxu0 0.0
        %458 = vmatpush1.msra.mxu0 0.0
        %459 = vmatprep.subr.mxu0 0.0
        %460 = vmatpush1.msra.mxu0 0.0
        %461 = vmatprep.subr.mxu0 0.0
        %462 = vmatpush1.msra.mxu0 0.0
        %463 = vmatprep.subr.mxu0 0.0
        %464 = vmatpush1.msra.mxu0 0.0
        %465 = vmatprep.subr.mxu0 0.0
        %466 = vmatpush1.msra.mxu0 0.0
        %467 = vmatprep.subr.mxu0 0.0
        %468 = vmatpush1.msra.mxu0 0.0
        %469 = vmatprep.subr.mxu0 0.0
        %470 = vmatpush1.msra.mxu0 0.0
        %471 = vmatprep.subr.mxu0 0.0
        %472 = vmatpush1.msra.mxu0 0.0
        %473 = vmatprep.subr.mxu0 0.0
        %474 = vmatpush1.msra.mxu0 0.0
        %475 = vmatprep.subr.mxu0 0.0
        %476 = vmatpush1.msra.mxu0 0.0
        %477 = vmatprep.subr.mxu0 0.0
        %478 = vmatpush1.msra.mxu0 0.0
        %479 = vmatprep.subr.mxu0 0.0
        %480 = vmatpush1.msra.mxu0 0.0
        %481 = vmatprep.subr.mxu0 0.0
        %482 = vmatpush1.msra.mxu0 0.0
        %483 = vmatprep.subr.mxu0 0.0
        %484 = vmatpush1.msra.mxu0 0.0
        %485 = vmatprep.subr.mxu0 0.0
        %486 = vmatpush1.msra.mxu0 0.0
        %487 = vmatprep.subr.mxu0 0.0
        %488 = vmatpush1.msra.mxu0 0.0
        %489 = vmatprep.mubr.f32.mxu0 0.0
        %490 = vmatmul.mubr.f32.gmra.mrb[0].mxu0 %v229
        %v491 = vpop.f32.mrb[0].mxu0
        %v492 = vadd.f32 0.0, %v491
        %v493 = vpop.f32.mrb[0].mxu0
        %494 = vmatprep.mubr.f32.mxu0 0.0
        %495 = vmatmul.mubr.f32.gmra.mrb[0].mxu0 %v232
        %v496 = vpop.f32.mrb[0].mxu0
        %v497 = vadd.f32 0.0, %v496
        %v498 = vpop.f32.mrb[0].mxu0
        %499 = vmatprep.mubr.f32.mxu0 0.0
        %500 = vmatmul.mubr.f32.gmra.mrb[0].mxu0 %v235
        %v501 = vpop.f32.mrb[0].mxu0
        %v502 = vadd.f32 0.0, %v501
        %v503 = vpop.f32.mrb[0].mxu0
        %504 = vmatprep.mubr.f32.mxu0 0.0
        %505 = vmatmul.mubr.f32.gmra.mrb[0].mxu0 %v238
        %v506 = vpop.f32.mrb[0].mxu0
        %v507 = vadd.f32 0.0, %v506
        %v508 = vpop.f32.mrb[0].mxu0
        %509 = vdwg.mxu0
        %s510 = scalar_lea.vmem [#allocation2], 64
        %511 = vst.msk [vmem:[%s510] sm:$0xff] %vm227, %v492
        %512 = vst.msk [vmem:[%s510 + $0x8] sm:$0xff] %vm227, %v497
        %513 = vst.msk [vmem:[%s510 + $0x10] sm:$0xff] %vm227, %v502
        %514 = vst.msk [vmem:[%s510 + $0x18] sm:$0xff] %vm227, %v507
        %s515 = scalar_lea.vmem %s194, 48 [#allocation8]
        %v516 = vld [vmem:[%s515] sm:$0xff]
        %v517 = vld [vmem:[%s515 + $0x8] sm:$0xff]
        %518 = vmatprep.subr.mxu0 0.0
        %519 = vmatpush1.msra.mxu0 %v516
        %520 = vmatprep.subr.mxu0 0.0
        %521 = vmatpush1.msra.mxu0 %v517
        %522 = vmatprep.subr.mxu0 0.0
        %523 = vmatpush1.msra.mxu0 0.0
        %524 = vmatprep.subr.mxu0 0.0
        %525 = vmatpush1.msra.mxu0 0.0
        %526 = vmatprep.subr.mxu0 0.0
        %527 = vmatpush1.msra.mxu0 0.0
        %528 = vmatprep.subr.mxu0 0.0
        %529 = vmatpush1.msra.mxu0 0.0
        %530 = vmatprep.subr.mxu0 0.0
        %531 = vmatpush1.msra.mxu0 0.0
        %532 = vmatprep.subr.mxu0 0.0
        %533 = vmatpush1.msra.mxu0 0.0
        %534 = vmatprep.subr.mxu0 0.0
        %535 = vmatpush1.msra.mxu0 0.0
        %536 = vmatprep.subr.mxu0 0.0
        %537 = vmatpush1.msra.mxu0 0.0
        %538 = vmatprep.subr.mxu0 0.0
        %539 = vmatpush1.msra.mxu0 0.0
        %540 = vmatprep.subr.mxu0 0.0
        %541 = vmatpush1.msra.mxu0 0.0
        %542 = vmatprep.subr.mxu0 0.0
        %543 = vmatpush1.msra.mxu0 0.0
        %544 = vmatprep.subr.mxu0 0.0
        %545 = vmatpush1.msra.mxu0 0.0
        %546 = vmatprep.subr.mxu0 0.0
        %547 = vmatpush1.msra.mxu0 0.0
        %548 = vmatprep.subr.mxu0 0.0
        %549 = vmatpush1.msra.mxu0 0.0
        %550 = vmatprep.subr.mxu0 0.0
        %551 = vmatpush1.msra.mxu0 0.0
        %552 = vmatprep.subr.mxu0 0.0
        %553 = vmatpush1.msra.mxu0 0.0
        %554 = vmatprep.subr.mxu0 0.0
        %555 = vmatpush1.msra.mxu0 0.0
        %556 = vmatprep.subr.mxu0 0.0
        %557 = vmatpush1.msra.mxu0 0.0
        %558 = vmatprep.subr.mxu0 0.0
        %559 = vmatpush1.msra.mxu0 0.0
        %560 = vmatprep.subr.mxu0 0.0
        %561 = vmatpush1.msra.mxu0 0.0
        %562 = vmatprep.subr.mxu0 0.0
        %563 = vmatpush1.msra.mxu0 0.0
        %564 = vmatprep.subr.mxu0 0.0
        %565 = vmatpush1.msra.mxu0 0.0
        %566 = vmatprep.subr.mxu0 0.0
        %567 = vmatpush1.msra.mxu0 0.0
        %568 = vmatprep.subr.mxu0 0.0
        %569 = vmatpush1.msra.mxu0 0.0
        %570 = vmatprep.subr.mxu0 0.0
        %571 = vmatpush1.msra.mxu0 0.0
        %572 = vmatprep.subr.mxu0 0.0
        %573 = vmatpush1.msra.mxu0 0.0
        %574 = vmatprep.subr.mxu0 0.0
        %575 = vmatpush1.msra.mxu0 0.0
        %576 = vmatprep.subr.mxu0 0.0
        %577 = vmatpush1.msra.mxu0 0.0
        %578 = vmatprep.subr.mxu0 0.0
        %579 = vmatpush1.msra.mxu0 0.0
        %580 = vmatprep.subr.mxu0 0.0
        %581 = vmatpush1.msra.mxu0 0.0
        %582 = vmatprep.mubr.f32.mxu0 0.0
        %583 = vmatmul.mubr.f32.gmra.mrb[0].mxu0 %v229
        %v584 = vpop.f32.mrb[0].mxu0
        %v585 = vadd.f32 0.0, %v584
        %v586 = vpop.f32.mrb[0].mxu0
        %587 = vmatprep.mubr.f32.mxu0 0.0
        %588 = vmatmul.mubr.f32.gmra.mrb[0].mxu0 %v232
        %v589 = vpop.f32.mrb[0].mxu0
        %v590 = vadd.f32 0.0, %v589
        %v591 = vpop.f32.mrb[0].mxu0
        %592 = vmatprep.mubr.f32.mxu0 0.0
        %593 = vmatmul.mubr.f32.gmra.mrb[0].mxu0 %v235
        %v594 = vpop.f32.mrb[0].mxu0
        %v595 = vadd.f32 0.0, %v594
        %v596 = vpop.f32.mrb[0].mxu0
        %597 = vmatprep.mubr.f32.mxu0 0.0
        %598 = vmatmul.mubr.f32.gmra.mrb[0].mxu0 %v238
        %v599 = vpop.f32.mrb[0].mxu0
        %v600 = vadd.f32 0.0, %v599
        %v601 = vpop.f32.mrb[0].mxu0
        %602 = vdwg.mxu0
        %s603 = scalar_lea.vmem [#allocation2], 96
        %604 = vst.msk [vmem:[%s603] sm:$0xff] %vm227, %v585
        %605 = vst.msk [vmem:[%s603 + $0x8] sm:$0xff] %vm227, %v590
        %606 = vst.msk [vmem:[%s603 + $0x10] sm:$0xff] %vm227, %v595
        %607 = vst.msk [vmem:[%s603 + $0x18] sm:$0xff] %vm227, %v600
        %v608 = vld [vmem:[#allocation2] sm:$0xff]
        %v609 = vld [vmem:[#allocation2 + $0x8] sm:$0xff]
        %v610 = vld [vmem:[#allocation2 + $0x10] sm:$0xff]
        %v611 = vld [vmem:[#allocation2 + $0x18] sm:$0xff]
        %v612 = vld [vmem:[#allocation2 + $0x20] sm:$0xff]
        %v613 = vld [vmem:[#allocation2 + $0x28] sm:$0xff]
        %v614 = vld [vmem:[#allocation2 + $0x30] sm:$0xff]
        %v615 = vld [vmem:[#allocation2 + $0x38] sm:$0xff]
        %v616 = vld [vmem:[#allocation2 + $0x40] sm:$0xff]
        %v617 = vld [vmem:[#allocation2 + $0x48] sm:$0xff]
        %v618 = vld [vmem:[#allocation2 + $0x50] sm:$0xff]
        %v619 = vld [vmem:[#allocation2 + $0x58] sm:$0xff]
        %v620 = vld [vmem:[#allocation2 + $0x60] sm:$0xff]
        %v621 = vld [vmem:[#allocation2 + $0x68] sm:$0xff]
        %v622 = vld [vmem:[#allocation2 + $0x70] sm:$0xff]
        %v623 = vld [vmem:[#allocation2 + $0x78] sm:$0xff]
        %v625 = vsel %vm227, %v608, 0
        %v628 = vsel %vm227, %v609, 0
        %v631 = vsel %vm227, %v610, 0
        %v634 = vsel %vm227, %v611, 0
        %v637 = vsel %vm227, %v612, 0
        %v640 = vsel %vm227, %v613, 0
        %v643 = vsel %vm227, %v614, 0
        %v646 = vsel %vm227, %v615, 0
        %v649 = vsel %vm227, %v616, 0
        %v652 = vsel %vm227, %v617, 0
        %v655 = vsel %vm227, %v618, 0
        %v658 = vsel %vm227, %v619, 0
        %v661 = vsel %vm227, %v620, 0
        %v664 = vsel %vm227, %v621, 0
        %v667 = vsel %vm227, %v622, 0
        %v670 = vsel %vm227, %v623, 0
        %672 = vmatprep.subr.mxu0 0.0
        %673 = vmatpush1.msra.mxu0 %v223
        %674 = vmatprep.subr.mxu0 0.0
        %675 = vmatpush1.msra.mxu0 %v224
        %676 = vmatprep.subr.mxu0 0.0
        %677 = vmatpush1.msra.mxu0 0.0
        %678 = vmatprep.subr.mxu0 0.0
        %679 = vmatpush1.msra.mxu0 0.0
        %680 = vmatprep.subr.mxu0 0.0
        %681 = vmatpush1.msra.mxu0 0.0
        %682 = vmatprep.subr.mxu0 0.0
        %683 = vmatpush1.msra.mxu0 0.0
        %684 = vmatprep.subr.mxu0 0.0
        %685 = vmatpush1.msra.mxu0 0.0
        %686 = vmatprep.subr.mxu0 0.0
        %687 = vmatpush1.msra.mxu0 0.0
        %688 = vmatprep.subr.mxu0 0.0
        %689 = vmatpush1.msra.mxu0 0.0
        %690 = vmatprep.subr.mxu0 0.0
        %691 = vmatpush1.msra.mxu0 0.0
        %692 = vmatprep.subr.mxu0 0.0
        %693 = vmatpush1.msra.mxu0 0.0
        %694 = vmatprep.subr.mxu0 0.0
        %695 = vmatpush1.msra.mxu0 0.0
        %696 = vmatprep.subr.mxu0 0.0
        %697 = vmatpush1.msra.mxu0 0.0
        %698 = vmatprep.subr.mxu0 0.0
        %699 = vmatpush1.msra.mxu0 0.0
        %700 = vmatprep.subr.mxu0 0.0
        %701 = vmatpush1.msra.mxu0 0.0
        %702 = vmatprep.subr.mxu0 0.0
        %703 = vmatpush1.msra.mxu0 0.0
        %704 = vmatprep.subr.mxu0 0.0
        %705 = vmatpush1.msra.mxu0 0.0
        %706 = vmatprep.subr.mxu0 0.0
        %707 = vmatpush1.msra.mxu0 0.0
        %708 = vmatprep.subr.mxu0 0.0
        %709 = vmatpush1.msra.mxu0 0.0
        %710 = vmatprep.subr.mxu0 0.0
        %711 = vmatpush1.msra.mxu0 0.0
        %712 = vmatprep.subr.mxu0 0.0
        %713 = vmatpush1.msra.mxu0 0.0
        %714 = vmatprep.subr.mxu0 0.0
        %715 = vmatpush1.msra.mxu0 0.0
        %716 = vmatprep.subr.mxu0 0.0
        %717 = vmatpush1.msra.mxu0 0.0
        %718 = vmatprep.subr.mxu0 0.0
        %719 = vmatpush1.msra.mxu0 0.0
        %720 = vmatprep.subr.mxu0 0.0
        %721 = vmatpush1.msra.mxu0 0.0
        %722 = vmatprep.subr.mxu0 0.0
        %723 = vmatpush1.msra.mxu0 0.0
        %724 = vmatprep.subr.mxu0 0.0
        %725 = vmatpush1.msra.mxu0 0.0
        %726 = vmatprep.subr.mxu0 0.0
        %727 = vmatpush1.msra.mxu0 0.0
        %728 = vmatprep.subr.mxu0 0.0
        %729 = vmatpush1.msra.mxu0 0.0
        %730 = vmatprep.subr.mxu0 0.0
        %731 = vmatpush1.msra.mxu0 0.0
        %732 = vmatprep.subr.mxu0 0.0
        %733 = vmatpush1.msra.mxu0 0.0
        %734 = vmatprep.subr.mxu0 0.0
        %735 = vmatpush1.msra.mxu0 0.0
        %736 = vmatprep.mubr.f32.mxu0 0.0
        %737 = vmatmul.mubr.f32.gmra.mrb[0].mxu0 %v625
        %v738 = vpop.f32.mrb[0].mxu0
        %v739 = vadd.f32 0.0, %v738
        %v740 = vpop.f32.mrb[0].mxu0
        %741 = vmatprep.mubr.f32.mxu0 0.0
        %742 = vmatmul.mubr.f32.gmra.mrb[0].mxu0 %v628
        %v743 = vpop.f32.mrb[0].mxu0
        %v744 = vadd.f32 0.0, %v743
        %v745 = vpop.f32.mrb[0].mxu0
        %746 = vmatprep.mubr.f32.mxu0 0.0
        %747 = vmatmul.mubr.f32.gmra.mrb[0].mxu0 %v631
        %v748 = vpop.f32.mrb[0].mxu0
        %v749 = vadd.f32 0.0, %v748
        %v750 = vpop.f32.mrb[0].mxu0
        %751 = vmatprep.mubr.f32.mxu0 0.0
        %752 = vmatmul.mubr.f32.gmra.mrb[0].mxu0 %v634
        %v753 = vpop.f32.mrb[0].mxu0
        %v754 = vadd.f32 0.0, %v753
        %v755 = vpop.f32.mrb[0].mxu0
        %756 = vmatprep.mubr.f32.mxu0 0.0
        %757 = vmatmul.mubr.f32.gmra.mrb[0].mxu0 %v637
        %v758 = vpop.f32.mrb[0].mxu0
        %v759 = vadd.f32 0.0, %v758
        %v760 = vpop.f32.mrb[0].mxu0
        %761 = vmatprep.mubr.f32.mxu0 0.0
        %762 = vmatmul.mubr.f32.gmra.mrb[0].mxu0 %v640
        %v763 = vpop.f32.mrb[0].mxu0
        %v764 = vadd.f32 0.0, %v763
        %v765 = vpop.f32.mrb[0].mxu0
        %766 = vmatprep.mubr.f32.mxu0 0.0
        %767 = vmatmul.mubr.f32.gmra.mrb[0].mxu0 %v643
        %v768 = vpop.f32.mrb[0].mxu0
        %v769 = vadd.f32 0.0, %v768
        %v770 = vpop.f32.mrb[0].mxu0
        %771 = vmatprep.mubr.f32.mxu0 0.0
        %772 = vmatmul.mubr.f32.gmra.mrb[0].mxu0 %v646
        %v773 = vpop.f32.mrb[0].mxu0
        %v774 = vadd.f32 0.0, %v773
        %v775 = vpop.f32.mrb[0].mxu0
        %776 = vmatprep.mubr.f32.mxu0 0.0
        %777 = vmatmul.mubr.f32.gmra.mrb[0].mxu0 %v649
        %v778 = vpop.f32.mrb[0].mxu0
        %v779 = vadd.f32 0.0, %v778
        %v780 = vpop.f32.mrb[0].mxu0
        %781 = vmatprep.mubr.f32.mxu0 0.0
        %782 = vmatmul.mubr.f32.gmra.mrb[0].mxu0 %v652
        %v783 = vpop.f32.mrb[0].mxu0
        %v784 = vadd.f32 0.0, %v783
        %v785 = vpop.f32.mrb[0].mxu0
        %786 = vmatprep.mubr.f32.mxu0 0.0
        %787 = vmatmul.mubr.f32.gmra.mrb[0].mxu0 %v655
        %v788 = vpop.f32.mrb[0].mxu0
        %v789 = vadd.f32 0.0, %v788
        %v790 = vpop.f32.mrb[0].mxu0
        %791 = vmatprep.mubr.f32.mxu0 0.0
        %792 = vmatmul.mubr.f32.gmra.mrb[0].mxu0 %v658
        %v793 = vpop.f32.mrb[0].mxu0
        %v794 = vadd.f32 0.0, %v793
        %v795 = vpop.f32.mrb[0].mxu0
        %796 = vmatprep.mubr.f32.mxu0 0.0
        %797 = vmatmul.mubr.f32.gmra.mrb[0].mxu0 %v661
        %v798 = vpop.f32.mrb[0].mxu0
        %v799 = vadd.f32 0.0, %v798
        %v800 = vpop.f32.mrb[0].mxu0
        %801 = vmatprep.mubr.f32.mxu0 0.0
        %802 = vmatmul.mubr.f32.gmra.mrb[0].mxu0 %v664
        %v803 = vpop.f32.mrb[0].mxu0
        %v804 = vadd.f32 0.0, %v803
        %v805 = vpop.f32.mrb[0].mxu0
        %806 = vmatprep.mubr.f32.mxu0 0.0
        %807 = vmatmul.mubr.f32.gmra.mrb[0].mxu0 %v667
        %v808 = vpop.f32.mrb[0].mxu0
        %v809 = vadd.f32 0.0, %v808
        %v810 = vpop.f32.mrb[0].mxu0
        %811 = vmatprep.mubr.f32.mxu0 0.0
        %812 = vmatmul.mubr.f32.gmra.mrb[0].mxu0 %v670
        %v813 = vpop.f32.mrb[0].mxu0
        %v814 = vadd.f32 0.0, %v813
        %v815 = vpop.f32.mrb[0].mxu0
        %816 = vdwg.mxu0
        %vm817 = vcmask 261120
        %818 = vst.msk [vmem:[%s216] sm:$0xff] %vm817, %v739
        %819 = vst.msk [vmem:[%s216 + $0x8] sm:$0xff] %vm817, %v744
        %820 = vst.msk [vmem:[%s216 + $0x10] sm:$0xff] %vm817, %v749
        %821 = vst.msk [vmem:[%s216 + $0x18] sm:$0xff] %vm817, %v754
        %822 = vst.msk [vmem:[%s216 + $0x20] sm:$0xff] %vm817, %v759
        %823 = vst.msk [vmem:[%s216 + $0x28] sm:$0xff] %vm817, %v764
        %824 = vst.msk [vmem:[%s216 + $0x30] sm:$0xff] %vm817, %v769
        %825 = vst.msk [vmem:[%s216 + $0x38] sm:$0xff] %vm817, %v774
        %826 = vst.msk [vmem:[%s216 + $0x40] sm:$0xff] %vm817, %v779
        %827 = vst.msk [vmem:[%s216 + $0x48] sm:$0xff] %vm817, %v784
        %828 = vst.msk [vmem:[%s216 + $0x50] sm:$0xff] %vm817, %v789
        %829 = vst.msk [vmem:[%s216 + $0x58] sm:$0xff] %vm817, %v794
        %830 = vst.msk [vmem:[%s216 + $0x60] sm:$0xff] %vm817, %v799
        %831 = vst.msk [vmem:[%s216 + $0x68] sm:$0xff] %vm817, %v804
        %832 = vst.msk [vmem:[%s216 + $0x70] sm:$0xff] %vm817, %v809
        %833 = vst.msk [vmem:[%s216 + $0x78] sm:$0xff] %vm817, %v814
        %s834 = sand.u32 %s95, 1
        %s835 = scalar_lea.sflag [#allocation5], %s834
        %s836 = sand.u32 %s95, 1
        %s837 = smul.addr %s836, 128
        %s838 = scalar_lea.vmem [#allocation9], %s837
        // Predicated region
        $region45: #{_pyr_up_impl.1} parent=31 // pred_check
          %p839 = pneg %p105
        $region46: #{_pyr_up_impl.1} parent=31 // pred_check_branch
          %841 = sbr.rel (%p839) target = $region48
        $region47: #{_pyr_up_impl.1} parent=31 // pred_region
          %s842 = smul.u32 4, %s19
          %s844 = ssub.s32 2048, 2048
          %845 = vsyncadd %s835, %s844
          %s846 = smul.addr %s842, 4
          %s847 = smul.addr %s846, 128
          %s848 = scalar_lea.hbm %s3, %s847
          %s849 = sshll.u32 %s838, 4
          %s850 = int_to_ptr.vmem [resolvable:$true] %s849
          %855 = dma.vmem_to_hbm [thread:$0]  %s850, 2048, %s848, %s835, 128, 128, 8
        $region48: #{_pyr_up_impl.1} parent=31 // pred_fallthru
          _
      $region32: #{_pyr_up_impl.1} parent=5 // pred_fallthru
        _
      %p856 = scmp.le.s32.totalorder 2, %s14
      // Predicated region
      $region49: #{_pyr_up_impl.1} parent=5 // pred_check
        %p857 = pneg %p856
      $region50: #{_pyr_up_impl.1} parent=5 // pred_check_branch
        %859 = sbr.rel (%p857) target = $region52
      $region51: #{_pyr_up_impl.1} parent=5 // pred_region
        %s860 = ssub.s32 %s14, 2
        // Predicated region
        $region53: #{_pyr_up_impl.1} parent=51 // pred_check
          %p861 = pneg %p111
        $region54: #{_pyr_up_impl.1} parent=51 // pred_check_branch
          %863 = sbr.rel (%p861) target = $region56
        $region55: #{_pyr_up_impl.1} parent=51 // pred_region
          %s864 = sand.u32 %s96, 1
          %s865 = scalar_lea.sflag [#allocation5], %s864
          %s866 = sand.u32 %s96, 1
          %s867 = smul.addr %s866, 128
          %s868 = scalar_lea.vmem [#allocation9], %s867
          %869 = dma.done %s865, 2048
        $region56: #{_pyr_up_impl.1} parent=51 // pred_fallthru
          _
      $region52: #{_pyr_up_impl.1} parent=5 // pred_fallthru
        _
    $region6: #{_pyr_up_impl.1} parent=1 // loop_footer
      %s18 = sadd.s32 1, %s14
    $region7: #{_pyr_up_impl.1} parent=1 // loop_footer_branch
      %13 = sbr.rel target = $region3
    $region8: #{_pyr_up_impl.1} parent=1 // loop_exit
      _
    %870 = vsyncpa [#allocation4], 1
    %s871 = scalar_lea.sflag [#allocation4], 1
    %872 = vsyncpa %s871, 1
    %873 = vsyncpa [#allocation7], 1
    %874 = vsyncpa [#allocation5], 1
    %s875 = scalar_lea.sflag [#allocation5], 1
    %876 = vsyncpa %s875, 1

</llo_original>
